<compile_context>
chip_gen: v6e
topology: v6e:2x2x1
jax: 0.10.0
libtpu: 0.0.40
codegen_flags: <defaults>
</compile_context>

<pallas_src>
import functools
import math

import jax
import jax.numpy as jnp
from jax import lax
from jax.experimental import pallas as pl
from jax.experimental.pallas import tpu as pltpu


def _dsconv_kernel(x_ref, dww_ref, pww_ref, bias_ref, mask_ref, o_ref, *, W):
    # x_ref   : (Nb*Cin,  HWp)  Nb folded images; (batch,channel) in sublanes, flat
    #                           (lane-padded) spatial in lanes
    # dww_ref : (Nb*Cin,  9)    depthwise 3x3 taps (tiled Nb x), column k = ky*3 + kx
    # pww_ref : (Nb*Cout, Nb*Cin) block-diagonal pointwise weights, BN scale folded in
    # bias_ref: (Nb*Cout, 1)    folded bias (depthwise bias + pointwise bias + BN shift)
    # mask_ref: (4, HWp)        halo masks: [dx=-1, dx=+1, dy=-1, dy=+1] as 0/1 f32
    # o_ref   : (Nb*Cout, HWp)
    x = x_ref[...]
    dww = dww_ref[...]
    hwp = x.shape[1]

    m_left = mask_ref[0:1, :]    # reading col-1 is in-bounds
    m_right = mask_ref[1:2, :]   # reading col+1 is in-bounds
    m_up = mask_ref[2:3, :]      # reading row-1 is in-bounds
    m_down = mask_ref[3:4, :]    # reading row+1 is in-bounds

    # ---- depthwise 3x3, stride 1, pad 1 -------------------------------------
    # Horizontal (dx) taps: lane-axis rotations (XLU, co-issues with VPU MACs),
    # out-of-image reads (including flat-layout row wraparound) zeroed by the
    # precomputed column masks.
    hx_m1 = pltpu.roll(x, shift=1 % hwp, axis=1) * m_left            # x[p-1]
    hx_p1 = pltpu.roll(x, shift=(hwp - 1) % hwp, axis=1) * m_right   # x[p+1]

    # Vertical (dy) taps: weight the three horizontal taps of each stencil row with
    # their per-(image,channel) weights (VPU), rotate the combined row by +/-W lanes
    # (XLU) and zero the rows that fall outside the image with the row masks.
    acc = None
    for ky, dy in enumerate((-1, 0, 1)):
        t = (hx_m1 * dww[:, 3 * ky + 0:3 * ky + 1]
             + x * dww[:, 3 * ky + 1:3 * ky + 2]
             + hx_p1 * dww[:, 3 * ky + 2:3 * ky + 3])
        if dy == -1:
            t = pltpu.roll(t, shift=W % hwp, axis=1) * m_up
        elif dy == 1:
            t = pltpu.roll(t, shift=(hwp - W) % hwp, axis=1) * m_down
        acc = t if acc is None else acc + t

    # ---- pointwise 1x1 conv (+ folded BN affine) + ReLU ---------------------
    # Block-diagonal (Nb*Cout, Nb*Cin) @ (Nb*Cin, HWp) on the MXU, lane-dense N.
    # K = Nb*Cin >= 8 by construction, so the MXU path is always used.
    z = jnp.dot(pww_ref[...], acc, preferred_element_type=jnp.float32)
    o_ref[...] = jnp.maximum(z + bias_ref[...], 0.0).astype(o_ref.dtype)


def depthwise_separable_conv(x_nchw, dw_w, dw_b, pw_w, pw_b,
                             bn_gamma, bn_beta, bn_mean, bn_var, eps=1e-5):
    """Forward pass of DepthwiseSeparableConv (kernel_size=3, stride=1, eval-mode BN).

    x_nchw: (N, Cin, H, W); PyTorch parameter layouts:
      dw_w (Cin, 1, 3, 3), dw_b (Cin,), pw_w (Cout, Cin, 1, 1), pw_b (Cout,),
      bn_* (Cout,).
    """
    N, Cin, H, W = x_nchw.shape
    Cout = pw_w.shape[0]
    HW = H * W
    HWp = ((HW + 127) // 128) * 128            # lane-pad to a multiple of 128

    # Batch-fold factor: smallest Nb with Nb*Cin a multiple of 8 (full sublanes).
    Nb = 8 // math.gcd(Cin, 8)
    Np = ((N + Nb - 1) // Nb) * Nb             # pad batch to a multiple of Nb
    G = Np // Nb

    # -- layout plumbing (contiguous reshapes; pads only when shapes require it) --
    xf = x_nchw.reshape(N, Cin, HW).astype(jnp.float32)
    if Np != N:
        xf = jnp.concatenate([xf, jnp.zeros((Np - N, Cin, HW), jnp.float32)], axis=0)
    if HWp != HW:
        xf = jnp.pad(xf, ((0, 0), (0, 0), (0, HWp - HW)))
    xf = xf.reshape(G, Nb * Cin, HWp)

    # -- weight-only constant folding (tiny tensors, once per model in practice) --
    #   y = relu( scale * (pw @ (dw(x) + dw_b) + pw_b - mean) + beta )
    #     = relu( (scale[:, None] * pw) @ dw(x) + bias_f )
    scale = (bn_gamma / jnp.sqrt(bn_var + eps)).astype(jnp.float32)         # (Cout,)
    pw_mat = pw_w[:, :, 0, 0].astype(jnp.float32)                           # (Cout, Cin)
    pww_f = pw_mat * scale[:, None]                                         # (Cout, Cin)
    bias_f = (pww_f @ dw_b.astype(jnp.float32)
              + (pw_b.astype(jnp.float32) - bn_mean.astype(jnp.float32)) * scale
              + bn_beta.astype(jnp.float32))                                # (Cout,)
    dww = dw_w[:, 0, :, :].reshape(Cin, 9).astype(jnp.float32)              # (Cin, 9)

    # Batch-folded parameter layouts.
    dww_t = jnp.tile(dww, (Nb, 1))                                          # (Nb*Cin, 9)
    if Nb > 1:
        pww_bd = jnp.kron(jnp.eye(Nb, dtype=jnp.float32), pww_f)            # block-diag
    else:
        pww_bd = pww_f                                                      # (Cout, Cin)
    bias_t = jnp.tile(bias_f, Nb).reshape(Nb * Cout, 1)                     # (Nb*Cout, 1)

    # Grid-invariant halo masks (hoisted out of the kernel body).
    pos = jnp.arange(HWp, dtype=jnp.int32)
    col = pos % W
    row = pos // W
    valid = pos < HW
    masks = jnp.stack([
        (col >= 1) & valid,          # dx = -1
        (col <= W - 2) & valid,      # dx = +1
        (row >= 1) & valid,          # dy = -1
        (row <= H - 2) & valid,      # dy = +1
    ]).astype(jnp.float32)                                                   # (4, HWp)

    # VMEM budget: double-buffered in/out blocks + ~6 live depthwise temporaries
    # + pointwise temporaries + grid-invariant constants.  Cap at 64 MiB (v7x).
    blk_in = Nb * Cin * HWp * 4
    blk_out = Nb * Cout * HWp * 4
    blk_const = (Nb * Cin * 9 + (Nb * Cout) * (Nb * Cin) + Nb * Cout + 4 * HWp) * 4
    vmem_need = 2 * (blk_in + blk_out) + 6 * blk_in + 2 * blk_out + blk_const
    vmem_limit = int(min(64 * 2**20, max(32 * 2**20, 2 * vmem_need)))

    cost = pl.CostEstimate(
        flops=int(Np) * HW * (18 * Cin + 2 * Cin * Cout + 2 * Cout),
        transcendentals=0,
        bytes_accessed=int(4 * (Np * (Cin + Cout) * HWp
                                + Cin * 9 + Cout * Cin + Cout + 4 * HWp)),
    )

    out_flat = pl.pallas_call(
        functools.partial(_dsconv_kernel, W=W),
        out_shape=jax.ShapeDtypeStruct((G, Nb * Cout, HWp), jnp.float32),
        grid=(G,),
        in_specs=[
            pl.BlockSpec((None, Nb * Cin, HWp), lambda g: (g, 0, 0)),  # folded images
            pl.BlockSpec((Nb * Cin, 9), lambda g: (0, 0)),             # grid-invariant
            pl.BlockSpec((Nb * Cout, Nb * Cin), lambda g: (0, 0)),     # grid-invariant
            pl.BlockSpec((Nb * Cout, 1), lambda g: (0, 0)),            # grid-invariant
            pl.BlockSpec((4, HWp), lambda g: (0, 0)),                  # grid-invariant
        ],
        out_specs=pl.BlockSpec((None, Nb * Cout, HWp), lambda g: (g, 0, 0)),
        compiler_params=pltpu.CompilerParams(
            dimension_semantics=("parallel",),
            vmem_limit_bytes=vmem_limit,
        ),
        cost_estimate=cost,
    )(xf, dww_t, pww_bd, bias_t, masks)

    # Unfold batch, strip lane padding, restore NCHW.
    out = out_flat.reshape(Np, Cout, HWp)[:N, :, :HW].reshape(N, Cout, H, W)
    return out


def _reference(x, dw_w, dw_b, pw_w, pw_b, gamma, beta, mean, var, eps=1e-5):
    """Pure-JAX reference matching the PyTorch forward (eval-mode BN)."""
    y = lax.conv_general_dilated(
        x, dw_w, window_strides=(1, 1), padding=((1, 1), (1, 1)),
        dimension_numbers=('NCHW', 'OIHW', 'NCHW'),
        feature_group_count=x.shape[1], precision=lax.Precision.HIGHEST)
    y = y + dw_b.reshape(1, -1, 1, 1)
    y = lax.conv_general_dilated(
        y, pw_w, window_strides=(1, 1), padding='VALID',
        dimension_numbers=('NCHW', 'OIHW', 'NCHW'),
        precision=lax.Precision.HIGHEST)
    y = y + pw_b.reshape(1, -1, 1, 1)
    inv = 1.0 / jnp.sqrt(var + eps)
    y = (y - mean.reshape(1, -1, 1, 1)) * (gamma * inv).reshape(1, -1, 1, 1) \
        + beta.reshape(1, -1, 1, 1)
    return jnp.maximum(y, 0.0)


if __name__ == "__main__":
    N, Cin, Cout, H, W = 2, 4, 8, 16, 16

    key = jax.random.PRNGKey(0)
    kx, kdw, kdb, kpw, kpb, kg, kb, km, kv = jax.random.split(key, 9)

    x = jax.random.normal(kx, (N, Cin, H, W), jnp.float32)

    # Deterministic synthetic parameters (PyTorch-layout shapes from __init__).
    dw_w = 0.1 * jax.random.normal(kdw, (Cin, 1, 3, 3), jnp.float32)
    dw_b = 0.05 * jax.random.normal(kdb, (Cin,), jnp.float32)
    pw_w = 0.1 * jax.random.normal(kpw, (Cout, Cin, 1, 1), jnp.float32)
    pw_b = 0.05 * jax.random.normal(kpb, (Cout,), jnp.float32)
    bn_gamma = 1.0 + 0.1 * jax.random.normal(kg, (Cout,), jnp.float32)
    bn_beta = 0.1 * jax.random.normal(kb, (Cout,), jnp.float32)
    bn_mean = 0.1 * jax.random.normal(km, (Cout,), jnp.float32)
    bn_var = 1.0 + 0.1 * jnp.abs(jax.random.normal(kv, (Cout,), jnp.float32))

    out = depthwise_separable_conv(x, dw_w, dw_b, pw_w, pw_b,
                                   bn_gamma, bn_beta, bn_mean, bn_var)
    out = jax.block_until_ready(out)

    ref = _reference(x, dw_w, dw_b, pw_w, pw_b,
                     bn_gamma, bn_beta, bn_mean, bn_var)
    assert out.shape == (N, Cout, H, W)
    err = jnp.max(jnp.abs(out - ref))
    assert jnp.allclose(out, ref, rtol=1e-3, atol=1e-3), f"max abs err {err}"

    print("KERNEL_OK")
</pallas_src>

<mosaic_0001>
module attributes {stable_mosaic.version = 11 : i64} {
  func.func @_dsconv_kernel(%arg0: i32, %arg1: memref<1x8x256xf32, #tpu.memory_space<vmem>>, %arg2: memref<8x9xf32, #tpu.memory_space<vmem>>, %arg3: memref<16x8xf32, #tpu.memory_space<vmem>>, %arg4: memref<16x1xf32, #tpu.memory_space<vmem>>, %arg5: memref<4x256xf32, #tpu.memory_space<vmem>>, %arg6: memref<1x16x256xf32, #tpu.memory_space<vmem>>) attributes {dimension_semantics = [#tpu.dimension_semantics<parallel>], iteration_bounds = array<i64: 1>, scalar_prefetch = 0 : i64, scratch_operands = 0 : i64, tpu.core_type = #tpu.core_type<tc>, window_params = [{transform_indices = @transform_0, window_bounds = array<i64: 1, 8, 256>}, {pipeline_mode = #tpu.pipeline_mode<synchronous>, transform_indices = @transform_1, window_bounds = array<i64: 8, 9>}, {pipeline_mode = #tpu.pipeline_mode<synchronous>, transform_indices = @transform_2, window_bounds = array<i64: 16, 8>}, {pipeline_mode = #tpu.pipeline_mode<synchronous>, transform_indices = @transform_3, window_bounds = array<i64: 16, 1>}, {pipeline_mode = #tpu.pipeline_mode<synchronous>, transform_indices = @transform_4, window_bounds = array<i64: 4, 256>}, {transform_indices = @transform_5, window_bounds = array<i64: 1, 16, 256>}]} {
    %c0 = arith.constant 0 : index
    %c0_0 = arith.constant 0 : index
    %c0_1 = arith.constant 0 : index
    %0 = vector.load %arg1[%c0, %c0_0, %c0_1] : memref<1x8x256xf32, #tpu.memory_space<vmem>>, vector<1x8x256xf32>
    %1 = vector.shape_cast %0 : vector<1x8x256xf32> to vector<8x256xf32>
    %c0_2 = arith.constant 0 : index
    %c0_3 = arith.constant 0 : index
    %2 = vector.load %arg2[%c0_2, %c0_3] : memref<8x9xf32, #tpu.memory_space<vmem>>, vector<8x9xf32>
    %c0_4 = arith.constant 0 : index
    %c0_5 = arith.constant 0 : index
    %3 = vector.load %arg5[%c0_4, %c0_5] : memref<4x256xf32, #tpu.memory_space<vmem>>, vector<1x256xf32>
    %c1 = arith.constant 1 : index
    %c0_6 = arith.constant 0 : index
    %4 = vector.load %arg5[%c1, %c0_6] : memref<4x256xf32, #tpu.memory_space<vmem>>, vector<1x256xf32>
    %c2 = arith.constant 2 : index
    %c0_7 = arith.constant 0 : index
    %5 = vector.load %arg5[%c2, %c0_7] : memref<4x256xf32, #tpu.memory_space<vmem>>, vector<1x256xf32>
    %c3 = arith.constant 3 : index
    %c0_8 = arith.constant 0 : index
    %6 = vector.load %arg5[%c3, %c0_8] : memref<4x256xf32, #tpu.memory_space<vmem>>, vector<1x256xf32>
    %c1_i32 = arith.constant 1 : i32
    %7 = tpu.dynamic_rotate %1 by %c1_i32 dim 1 : vector<8x256xf32>, i32 -> vector<8x256xf32>
    %8 = vector.broadcast %3 : vector<1x256xf32> to vector<8x256xf32>
    %9 = arith.mulf %7, %8 : vector<8x256xf32>
    %c255_i32 = arith.constant 255 : i32
    %10 = tpu.dynamic_rotate %1 by %c255_i32 dim 1 : vector<8x256xf32>, i32 -> vector<8x256xf32>
    %11 = vector.broadcast %4 : vector<1x256xf32> to vector<8x256xf32>
    %12 = arith.mulf %10, %11 : vector<8x256xf32>
    %13 = vector.extract_strided_slice %2 {offsets = [0, 0], sizes = [8, 1], strides = [1, 1]} : vector<8x9xf32> to vector<8x1xf32>
    %14 = vector.broadcast %13 : vector<8x1xf32> to vector<8x256xf32>
    %15 = arith.mulf %9, %14 : vector<8x256xf32>
    %16 = vector.extract_strided_slice %2 {offsets = [0, 1], sizes = [8, 1], strides = [1, 1]} : vector<8x9xf32> to vector<8x1xf32>
    %17 = vector.broadcast %16 : vector<8x1xf32> to vector<8x256xf32>
    %18 = arith.mulf %1, %17 : vector<8x256xf32>
    %19 = arith.addf %15, %18 : vector<8x256xf32>
    %20 = vector.extract_strided_slice %2 {offsets = [0, 2], sizes = [8, 1], strides = [1, 1]} : vector<8x9xf32> to vector<8x1xf32>
    %21 = vector.broadcast %20 : vector<8x1xf32> to vector<8x256xf32>
    %22 = arith.mulf %12, %21 : vector<8x256xf32>
    %23 = arith.addf %19, %22 : vector<8x256xf32>
    %c16_i32 = arith.constant 16 : i32
    %24 = tpu.dynamic_rotate %23 by %c16_i32 dim 1 : vector<8x256xf32>, i32 -> vector<8x256xf32>
    %25 = vector.broadcast %5 : vector<1x256xf32> to vector<8x256xf32>
    %26 = arith.mulf %24, %25 : vector<8x256xf32>
    %27 = vector.extract_strided_slice %2 {offsets = [0, 3], sizes = [8, 1], strides = [1, 1]} : vector<8x9xf32> to vector<8x1xf32>
    %28 = vector.broadcast %27 : vector<8x1xf32> to vector<8x256xf32>
    %29 = arith.mulf %9, %28 : vector<8x256xf32>
    %30 = vector.extract_strided_slice %2 {offsets = [0, 4], sizes = [8, 1], strides = [1, 1]} : vector<8x9xf32> to vector<8x1xf32>
    %31 = vector.broadcast %30 : vector<8x1xf32> to vector<8x256xf32>
    %32 = arith.mulf %1, %31 : vector<8x256xf32>
    %33 = arith.addf %29, %32 : vector<8x256xf32>
    %34 = vector.extract_strided_slice %2 {offsets = [0, 5], sizes = [8, 1], strides = [1, 1]} : vector<8x9xf32> to vector<8x1xf32>
    %35 = vector.broadcast %34 : vector<8x1xf32> to vector<8x256xf32>
    %36 = arith.mulf %12, %35 : vector<8x256xf32>
    %37 = arith.addf %33, %36 : vector<8x256xf32>
    %38 = arith.addf %26, %37 : vector<8x256xf32>
    %39 = vector.extract_strided_slice %2 {offsets = [0, 6], sizes = [8, 1], strides = [1, 1]} : vector<8x9xf32> to vector<8x1xf32>
    %40 = vector.broadcast %39 : vector<8x1xf32> to vector<8x256xf32>
    %41 = arith.mulf %9, %40 : vector<8x256xf32>
    %42 = vector.extract_strided_slice %2 {offsets = [0, 7], sizes = [8, 1], strides = [1, 1]} : vector<8x9xf32> to vector<8x1xf32>
    %43 = vector.broadcast %42 : vector<8x1xf32> to vector<8x256xf32>
    %44 = arith.mulf %1, %43 : vector<8x256xf32>
    %45 = arith.addf %41, %44 : vector<8x256xf32>
    %46 = vector.extract_strided_slice %2 {offsets = [0, 8], sizes = [8, 1], strides = [1, 1]} : vector<8x9xf32> to vector<8x1xf32>
    %47 = vector.broadcast %46 : vector<8x1xf32> to vector<8x256xf32>
    %48 = arith.mulf %12, %47 : vector<8x256xf32>
    %49 = arith.addf %45, %48 : vector<8x256xf32>
    %c240_i32 = arith.constant 240 : i32
    %50 = tpu.dynamic_rotate %49 by %c240_i32 dim 1 : vector<8x256xf32>, i32 -> vector<8x256xf32>
    %51 = vector.broadcast %6 : vector<1x256xf32> to vector<8x256xf32>
    %52 = arith.mulf %50, %51 : vector<8x256xf32>
    %53 = arith.addf %38, %52 : vector<8x256xf32>
    %c0_9 = arith.constant 0 : index
    %c0_10 = arith.constant 0 : index
    %54 = vector.load %arg3[%c0_9, %c0_10] : memref<16x8xf32, #tpu.memory_space<vmem>>, vector<16x8xf32>
    %cst = arith.constant dense<0.000000e+00> : vector<16x256xf32>
    %55 = tpu.matmul %54, %53, %cst {dimension_numbers = #tpu.dot_dimension_numbers<[1], [0], [0], [1], [0, 0, 1, 1], [], []>} : vector<16x8xf32>, vector<8x256xf32>, vector<16x256xf32> -> vector<16x256xf32>
    %c0_11 = arith.constant 0 : index
    %c0_12 = arith.constant 0 : index
    %56 = vector.load %arg4[%c0_11, %c0_12] : memref<16x1xf32, #tpu.memory_space<vmem>>, vector<16x1xf32>
    %57 = vector.broadcast %56 : vector<16x1xf32> to vector<16x256xf32>
    %58 = arith.addf %55, %57 : vector<16x256xf32>
    %cst_13 = arith.constant 0.000000e+00 : f32
    %59 = vector.broadcast %cst_13 : f32 to vector<16x256xf32>
    %60 = arith.maximumf %58, %59 : vector<16x256xf32>
    %c0_14 = arith.constant 0 : index
    %c0_15 = arith.constant 0 : index
    %c0_16 = arith.constant 0 : index
    %61 = vector.load %arg6[%c0_14, %c0_15, %c0_16] : memref<1x16x256xf32, #tpu.memory_space<vmem>>, vector<1x16x256xf32>
    %62 = vector.shape_cast %61 : vector<1x16x256xf32> to vector<16x256xf32>
    %63 = vector.shape_cast %60 : vector<16x256xf32> to vector<1x16x256xf32>
    tpu.vector_store %arg6[%c0_14, %c0_15, %c0_16], %63 {strides = array<i32>} : memref<1x16x256xf32, #tpu.memory_space<vmem>>, vector<1x16x256xf32>,
    return
  }
  func.func @transform_0(%arg0: i32) -> (i32, i32, i32) {
    %c0_i32 = arith.constant 0 : i32
    %c0_i32_0 = arith.constant 0 : i32
    %c0_i32_1 = arith.constant 0 : i32
    return %arg0, %c0_i32, %c0_i32_0 : i32, i32, i32
  }
  func.func @transform_1(%arg0: i32) -> (i32, i32) {
    %c0_i32 = arith.constant 0 : i32
    %c0_i32_0 = arith.constant 0 : i32
    %c0_i32_1 = arith.constant 0 : i32
    return %c0_i32, %c0_i32_0 : i32, i32
  }
  func.func @transform_2(%arg0: i32) -> (i32, i32) {
    %c0_i32 = arith.constant 0 : i32
    %c0_i32_0 = arith.constant 0 : i32
    %c0_i32_1 = arith.constant 0 : i32
    return %c0_i32, %c0_i32_0 : i32, i32
  }
  func.func @transform_3(%arg0: i32) -> (i32, i32) {
    %c0_i32 = arith.constant 0 : i32
    %c0_i32_0 = arith.constant 0 : i32
    %c0_i32_1 = arith.constant 0 : i32
    return %c0_i32, %c0_i32_0 : i32, i32
  }
  func.func @transform_4(%arg0: i32) -> (i32, i32) {
    %c0_i32 = arith.constant 0 : i32
    %c0_i32_0 = arith.constant 0 : i32
    %c0_i32_1 = arith.constant 0 : i32
    return %c0_i32, %c0_i32_0 : i32, i32
  }
  func.func @transform_5(%arg0: i32) -> (i32, i32, i32) {
    %c0_i32 = arith.constant 0 : i32
    %c0_i32_0 = arith.constant 0 : i32
    %c0_i32_1 = arith.constant 0 : i32
    return %arg0, %c0_i32, %c0_i32_0 : i32, i32, i32
  }
}

</mosaic_0001>

<llo_original>
// kernel: tpu_custom_call.1
$region0: #{tpu_custom_call.1}
  #allocation0 [shape = 'u32[]', space=smem, size = 0x4, offset = 0x4, fixed_abs, tag = 'smem constant byte address 0x4 - core index']
  #allocation1 [shape = 'u32[144,128]{1,0:T(1,128)}', space=vmem, size = 0x12000, scoped, tag = 'internal scratch']
  %s0 = inlined_call_operand.vmem [shape: f32[1,8,256], index: 0, kind: input, shape index: {}]
  %s1 = inlined_call_operand.vmem [shape: f32[8,9], index: 1, kind: input, shape index: {}]
  %s2 = inlined_call_operand.vmem [shape: f32[16,8], index: 2, kind: input, shape index: {}]
  %s3 = inlined_call_operand.vmem [shape: f32[16,1], index: 3, kind: input, shape index: {}]
  %s4 = inlined_call_operand.vmem [shape: f32[4,256], index: 4, kind: input, shape index: {}]
  %s5 = inlined_call_operand.hbm [shape: f32[1,16,256], index: 5, kind: output, shape index: {}]
  %s6 = sld [smem:[#allocation0]]
  $region30: #{tpu_custom_call.1} parent=0
    _
  %s8 = ssub.s32 1, %s6
  %s9 = scalar_select 0, %s8, %s6
  $region1: #{tpu_custom_call.1} parent=0
    #allocation2 [shape = 'u8[16384]{0}', space=vmem, size = 0x4000, scoped, tag = 'output window, operand 0, single buffered']
    #allocation3 [shape = 's32[1]{0}', space=sflag, size = 0x4, scoped, tag = 'scoped memory for tpu_custom_call.1']
    %10 = vsyncpa [#allocation3], 0
    // Predicated region
    $region2: #{tpu_custom_call.1} parent=1 // pred_check
      _
    $region3: #{tpu_custom_call.1} parent=1 // pred_check_branch
      %12 = sbr.rel (0) target = $region5
    $region4: #{tpu_custom_call.1} parent=1 // pred_region
      _
    $region5: #{tpu_custom_call.1} parent=1 // pred_fallthru
      _
    // Predicated region
    $region6: #{tpu_custom_call.1} parent=1 // pred_check
      _
    $region7: #{tpu_custom_call.1} parent=1 // pred_check_branch
      %14 = sbr.rel (0) target = $region9
    $region8: #{tpu_custom_call.1} parent=1 // pred_region
      _
    $region9: #{tpu_custom_call.1} parent=1 // pred_fallthru
      _
    // Predicated region
    $region10: #{tpu_custom_call.1} parent=1 // pred_check
      _
    $region11: #{tpu_custom_call.1} parent=1 // pred_check_branch
      %16 = sbr.rel (0) target = $region13
    $region12: #{tpu_custom_call.1} parent=1 // pred_region
      _
    $region13: #{tpu_custom_call.1} parent=1 // pred_fallthru
      _
    // Predicated region
    $region14: #{tpu_custom_call.1} parent=1 // pred_check
      _
    $region15: #{tpu_custom_call.1} parent=1 // pred_check_branch
      %18 = sbr.rel (0) target = $region17
    $region16: #{tpu_custom_call.1} parent=1 // pred_region
      _
    $region17: #{tpu_custom_call.1} parent=1 // pred_fallthru
      _
    // Predicated region
    $region18: #{tpu_custom_call.1} parent=1 // pred_check
      _
    $region19: #{tpu_custom_call.1} parent=1 // pred_check_branch
      %20 = sbr.rel (0) target = $region21
    $region20: #{tpu_custom_call.1} parent=1 // pred_region
      _
    $region21: #{tpu_custom_call.1} parent=1 // pred_fallthru
      _
    %v21 = vld [vmem:[%s0] sm:$0xff]
    %v22 = vld [vmem:[%s0 + $0x8] sm:$0xff]
    %v23 = vld [vmem:[%s1] sm:$0xff]
    %v24 = vld [vmem:[%s4] ss:$4 sm:$0x3]
    %s25 = scalar_lea.vmem %s4, 1
    %v26 = vld [vmem:[%s25] ss:$4 sm:$0x3]
    %s27 = scalar_lea.vmem %s4, 2
    %v28 = vld [vmem:[%s27] ss:$4 sm:$0x3]
    %s29 = scalar_lea.vmem %s4, 3
    %v30 = vld [vmem:[%s29] ss:$4 sm:$0x3]
    %31 = vrot.lane.b32.xlu0 %v21, 1
    %v32 = vpop.permute.xlu0 %31
    %33 = vrot.lane.b32.xlu0 %v22, 1
    %v34 = vpop.permute.xlu0 %33
    %v35 = vlaneseq
    %v36 = vand.u32 %v35, 127
    %vm37 = vcmp.lt.s32.totalorder %v36, 1
    %v38 = vsel %vm37, %v32, %v34
    %v39 = vsel %vm37, %v34, %v32
    %v41 = vlaneseq
    %v42 = vshrl.u32 %v41, 7
    %v43 = vsub.s32 0, %v42
    %v44 = vrot.slane %v24, %v43
    %v45 = vlaneseq
    %v46 = vshrl.u32 %v45, 7
    %v47 = vsub.s32 1, %v46
    %v48 = vrot.slane %v24, %v47
    %v51 = vmul.f32 %v39, %v44
    %v52 = vmul.f32 %v38, %v48
    %53 = vrot.lane.b32.xlu0 %v21, 127
    %v54 = vpop.permute.xlu0 %53
    %55 = vrot.lane.b32.xlu0 %v22, 127
    %v56 = vpop.permute.xlu0 %55
    %vm57 = vcmp.lt.s32.totalorder %v36, 127
    %v58 = vsel %vm57, %v54, %v56
    %v59 = vsel %vm57, %v56, %v54
    %v61 = vlaneseq
    %v62 = vshrl.u32 %v61, 7
    %v63 = vsub.s32 0, %v62
    %v64 = vrot.slane %v26, %v63
    %v65 = vlaneseq
    %v66 = vshrl.u32 %v65, 7
    %v67 = vsub.s32 1, %v66
    %v68 = vrot.slane %v26, %v67
    %v71 = vmul.f32 %v58, %v64
    %v72 = vmul.f32 %v59, %v68
    %74 = vset.pattern.permute.xlu0 0
    %75 = vperm.xlu0 %74, %v23
    %v76 = vpop.permute.xlu0 %75
    %v78 = vmul.f32 %v51, %v76
    %v79 = vmul.f32 %v52, %v76
    %80 = vset.pattern.permute.xlu0 1
    %81 = vperm.xlu0 %80, %v23
    %v82 = vpop.permute.xlu0 %81
    %v84 = vmul.f32 %v21, %v82
    %v85 = vmul.f32 %v22, %v82
    %v86 = vadd.f32 %v78, %v84
    %v87 = vadd.f32 %v79, %v85
    %88 = vset.pattern.permute.xlu0 2
    %89 = vperm.xlu0 %88, %v23
    %v90 = vpop.permute.xlu0 %89
    %v92 = vmul.f32 %v71, %v90
    %v93 = vmul.f32 %v72, %v90
    %v94 = vadd.f32 %v86, %v92
    %v95 = vadd.f32 %v87, %v93
    %96 = vrot.lane.b32.xlu0 %v94, 16
    %v97 = vpop.permute.xlu0 %96
    %98 = vrot.lane.b32.xlu0 %v95, 16
    %v99 = vpop.permute.xlu0 %98
    %vm100 = vcmp.lt.s32.totalorder %v36, 16
    %v101 = vsel %vm100, %v97, %v99
    %v102 = vsel %vm100, %v99, %v97
    %v104 = vlaneseq
    %v105 = vshrl.u32 %v104, 7
    %v106 = vsub.s32 0, %v105
    %v107 = vrot.slane %v28, %v106
    %v108 = vlaneseq
    %v109 = vshrl.u32 %v108, 7
    %v110 = vsub.s32 1, %v109
    %v111 = vrot.slane %v28, %v110
    %v114 = vmul.f32 %v102, %v107
    %v115 = vmul.f32 %v101, %v111
    %116 = vset.pattern.permute.xlu0 3
    %117 = vperm.xlu0 %116, %v23
    %v118 = vpop.permute.xlu0 %117
    %v120 = vmul.f32 %v51, %v118
    %v121 = vmul.f32 %v52, %v118
    %122 = vset.pattern.permute.xlu0 4
    %123 = vperm.xlu0 %122, %v23
    %v124 = vpop.permute.xlu0 %123
    %v126 = vmul.f32 %v21, %v124
    %v127 = vmul.f32 %v22, %v124
    %v128 = vadd.f32 %v120, %v126
    %v129 = vadd.f32 %v121, %v127
    %130 = vset.pattern.permute.xlu0 5
    %131 = vperm.xlu0 %130, %v23
    %v132 = vpop.permute.xlu0 %131
    %v134 = vmul.f32 %v71, %v132
    %v135 = vmul.f32 %v72, %v132
    %v136 = vadd.f32 %v128, %v134
    %v137 = vadd.f32 %v129, %v135
    %v138 = vadd.f32 %v114, %v136
    %v139 = vadd.f32 %v115, %v137
    %140 = vset.pattern.permute.xlu0 6
    %141 = vperm.xlu0 %140, %v23
    %v142 = vpop.permute.xlu0 %141
    %v144 = vmul.f32 %v51, %v142
    %v145 = vmul.f32 %v52, %v142
    %146 = vset.pattern.permute.xlu0 7
    %147 = vperm.xlu0 %146, %v23
    %v148 = vpop.permute.xlu0 %147
    %v150 = vmul.f32 %v21, %v148
    %v151 = vmul.f32 %v22, %v148
    %v152 = vadd.f32 %v144, %v150
    %v153 = vadd.f32 %v145, %v151
    %154 = vset.pattern.permute.xlu0 8
    %155 = vperm.xlu0 %154, %v23
    %v156 = vpop.permute.xlu0 %155
    %v158 = vmul.f32 %v71, %v156
    %v159 = vmul.f32 %v72, %v156
    %v160 = vadd.f32 %v152, %v158
    %v161 = vadd.f32 %v153, %v159
    %162 = vrot.lane.b32.xlu0 %v160, 112
    %v163 = vpop.permute.xlu0 %162
    %164 = vrot.lane.b32.xlu0 %v161, 112
    %v165 = vpop.permute.xlu0 %164
    %vm166 = vcmp.lt.s32.totalorder %v36, 112
    %v167 = vsel %vm166, %v163, %v165
    %v168 = vsel %vm166, %v165, %v163
    %v170 = vlaneseq
    %v171 = vshrl.u32 %v170, 7
    %v172 = vsub.s32 0, %v171
    %v173 = vrot.slane %v30, %v172
    %v174 = vlaneseq
    %v175 = vshrl.u32 %v174, 7
    %v176 = vsub.s32 1, %v175
    %v177 = vrot.slane %v30, %v176
    %v180 = vmul.f32 %v167, %v173
    %v181 = vmul.f32 %v168, %v177
    %v182 = vadd.f32 %v138, %v180
    %v183 = vadd.f32 %v139, %v181
    %v184 = vld [vmem:[%s2] sm:$0xff]
    %v185 = vld [vmem:[%s2 + $0x8] sm:$0xff]
    %v186 = vld [vmem:[%s3] sm:$0xff]
    %v187 = vld [vmem:[%s3 + $0x8] sm:$0xff]
    %189 = vset.pattern.permute.xlu0 0
    %190 = vperm.xlu0 %189, %v186
    %v191 = vpop.permute.xlu0 %190
    %194 = vset.pattern.permute.xlu0 0
    %195 = vperm.xlu0 %194, %v187
    %v196 = vpop.permute.xlu0 %195
    %vm198 = vcmask 64512
    %v200 = vsel %vm198, %v184, 0
    %v203 = vsel %vm198, %v185, 0
    %205 = vmatprep.subr.mxu0 0.0
    %206 = vmatpush1.msra.mxu0 0.0
    %207 = vmatprep.subr.mxu0 0.0
    %208 = vmatpush1.msra.mxu0 0.0
    %209 = vmatprep.subr.mxu0 0.0
    %210 = vmatpush1.msra.mxu0 0.0
    %211 = vmatprep.subr.mxu0 0.0
    %212 = vmatpush1.msra.mxu0 0.0
    %213 = vmatprep.subr.mxu0 0.0
    %214 = vmatpush1.msra.mxu0 0.0
    %215 = vmatprep.subr.mxu0 0.0
    %216 = vmatpush1.msra.mxu0 0.0
    %217 = vmatprep.subr.mxu0 0.0
    %218 = vmatpush1.msra.mxu0 0.0
    %219 = vmatprep.subr.mxu0 0.0
    %220 = vmatpush1.msra.mxu0 0.0
    %221 = vmatprep.subr.mxu0 0.0
    %222 = vmatpush1.msra.mxu0 0.0
    %223 = vmatprep.subr.mxu0 0.0
    %224 = vmatpush1.msra.mxu0 0.0
    %225 = vmatprep.subr.mxu0 0.0
    %226 = vmatpush1.msra.mxu0 0.0
    %227 = vmatprep.subr.mxu0 0.0
    %228 = vmatpush1.msra.mxu0 0.0
    %229 = vmatprep.subr.mxu0 0.0
    %230 = vmatpush1.msra.mxu0 0.0
    %231 = vmatprep.subr.mxu0 0.0
    %232 = vmatpush1.msra.mxu0 0.0
    %233 = vmatprep.subr.mxu0 0.0
    %234 = vmatpush1.msra.mxu0 0.0
    %235 = vmatprep.subr.mxu0 %v183
    %236 = vmatpush1.msra.mxu0 %v182
    %237 = vmatprep.subr.mxu0 0.0
    %238 = vmatpush2.msra.mxu0 0.0
    %239 = vmatprep.subr.mxu0 0.0
    %240 = vmatpush2.msra.mxu0 0.0
    %241 = vmatprep.subr.mxu0 0.0
    %242 = vmatpush2.msra.mxu0 0.0
    %243 = vmatprep.subr.mxu0 0.0
    %244 = vmatpush2.msra.mxu0 0.0
    %245 = vmatprep.subr.mxu0 0.0
    %246 = vmatpush2.msra.mxu0 0.0
    %247 = vmatprep.subr.mxu0 0.0
    %248 = vmatpush2.msra.mxu0 0.0
    %249 = vmatprep.subr.mxu0 0.0
    %250 = vmatpush2.msra.mxu0 0.0
    %251 = vmatprep.subr.mxu0 0.0
    %252 = vmatpush2.msra.mxu0 0.0
    %253 = vmatprep.subr.mxu0 0.0
    %254 = vmatpush2.msra.mxu0 0.0
    %255 = vmatprep.subr.mxu0 0.0
    %256 = vmatpush2.msra.mxu0 0.0
    %257 = vmatprep.subr.mxu0 0.0
    %258 = vmatpush2.msra.mxu0 0.0
    %259 = vmatprep.subr.mxu0 0.0
    %260 = vmatpush2.msra.mxu0 0.0
    %261 = vmatprep.subr.mxu0 0.0
    %262 = vmatpush2.msra.mxu0 0.0
    %263 = vmatprep.subr.mxu0 0.0
    %264 = vmatpush2.msra.mxu0 0.0
    %265 = vmatprep.subr.mxu0 0.0
    %266 = vmatpush2.msra.mxu0 0.0
    %267 = vmatprep.subr.mxu0 0.0
    %268 = vmatpush2.msra.mxu0 0.0
    %269 = vmatprep.mubr.f32.mxu0 0.0
    %270 = vmatmul.mubr.f32.gmra.mxu0 %v200
    %v271 = vpop.f32.mrf.mxu0
    %v272 = vadd.f32 %v191, %v271
    %v273 = vpop.f32.mrf.mxu0
    %v274 = vadd.f32 %v191, %v273
    %275 = vmatprep.mubr.f32.mxu0 0.0
    %276 = vmatmul.mubr.f32.gmra.mxu0 %v203
    %v277 = vpop.f32.mrf.mxu0
    %v278 = vadd.f32 %v196, %v277
    %v279 = vpop.f32.mrf.mxu0
    %v280 = vadd.f32 %v196, %v279
    %281 = vdwg.mxu0
    %v282 = vmax.f32 %v272, 0.0
    %v283 = vmax.f32 %v274, 0.0
    %v284 = vmax.f32 %v278, 0.0
    %v285 = vmax.f32 %v280, 0.0
    %286 = vst [vmem:[#allocation2] sm:$0xff] %v282
    %287 = vst [vmem:[#allocation2 + $0x8] sm:$0xff] %v283
    %288 = vst [vmem:[#allocation2 + $0x10] sm:$0xff] %v284
    %289 = vst [vmem:[#allocation2 + $0x18] sm:$0xff] %v285
    // Predicated region
    $region22: #{tpu_custom_call.1} parent=1 // pred_check
      _
    $region23: #{tpu_custom_call.1} parent=1 // pred_check_branch
      %291 = sbr.rel (0) target = $region25
    $region24: #{tpu_custom_call.1} parent=1 // pred_region
      %s293 = ssub.s32 512, 512
      %294 = vsyncadd [#allocation3], %s293
      %s295 = sshll.u32 [#allocation2], 4
      %s296 = int_to_ptr.vmem [resolvable:$true] %s295
      %301 = dma.vmem_to_hbm [thread:$0]  %s296, 512, %s5, [#allocation3], 256, 256, 16
    $region25: #{tpu_custom_call.1} parent=1 // pred_fallthru
      _
    // Predicated region
    $region26: #{tpu_custom_call.1} parent=1 // pred_check
      _
    $region27: #{tpu_custom_call.1} parent=1 // pred_check_branch
      %303 = sbr.rel (0) target = $region29
    $region28: #{tpu_custom_call.1} parent=1 // pred_region
      %304 = dma.done [#allocation3], 512
    $region29: #{tpu_custom_call.1} parent=1 // pred_fallthru
      _
    %305 = vsyncpa [#allocation3], 1

</llo_original>
